<compile_context>
chip_gen: v7x
topology: tpu7x:2x2x1
jax: 0.10.0
libtpu: 0.0.40
codegen_flags: <defaults>
</compile_context>

<pallas_src>
import math

import jax
import jax.numpy as jnp
from jax import lax
from jax.experimental import pallas as pl
from jax.experimental.pallas import tpu as pltpu


_TM_MAX = 256                       # fills the 256-wide MXU on v6e/v7x
_TN_CANDIDATES = (2048, 1024, 512, 256, 128)


def _round_up(x: int, m: int) -> int:
    return ((x + m - 1) // m) * m


def _vmem_capacity_bytes() -> int:
    try:
        return int(pltpu.get_tpu_info().vmem_capacity_bytes)
    except Exception:
        return 64 << 20             # conservative: v7x per-TensorCore VMEM


def _tile_vmem_bytes(tm, tn, K, x_item, w_item, out_item) -> int:
    # Double-buffered streams + in-kernel f32 temporaries (w copy, normalized
    # w, f32 accumulator).
    w_stream = 2 * tn * K * w_item
    x_stream = 2 * tm * K * x_item
    o_stream = 2 * tm * tn * out_item
    temps = tn * K * 4 + tn * K * w_item + tm * tn * 4
    return w_stream + x_stream + o_stream + temps


def _normal_fc_kernel(x_ref, w_ref, o_ref):
    # x_ref: (TM, K), w_ref: (TN, K), o_ref: (TM, TN)
    # In-kernel row norm: VPU reduce + EUP rsqrt, free filler under weight DMA.
    w = w_ref[...].astype(jnp.float32)                       # (TN, K)
    ssq = jnp.sum(w * w, axis=-1, keepdims=True)             # (TN, 1)
    inv = lax.rsqrt(jnp.maximum(ssq, 1e-24))                 # == 1/max(||w||, 1e-12)
    w_n = (w * inv).astype(w_ref.dtype)                      # row-normalized weight
    acc = lax.dot_general(                                   # (TM, TN), f32 acc on MXU
        x_ref[...], w_n,
        dimension_numbers=(((1,), (1,)), ((), ())),
        preferred_element_type=jnp.float32,
    )
    o_ref[...] = acc.astype(o_ref.dtype)


def normal_fc_layer(x, weight, label=None, *, tm=None, tn=None):
    """x: [B, in_features], weight: [out_features, in_features] -> [B, out_features].

    `label` is accepted and ignored (matches the PyTorch forward signature).
    """
    del label
    B, K = x.shape
    N, K2 = weight.shape
    assert K == K2, f"in_features mismatch: {K} vs {K2}"

    x_item = jnp.dtype(x.dtype).itemsize
    w_item = jnp.dtype(weight.dtype).itemsize
    out_item = x_item

    # Tile sizes: tm multiple of 8 (sublanes); tn multiple of 128 (lane-dense),
    # largest that fits the per-generation VMEM budget.
    if tm is None:
        tm = min(_round_up(B, 8), _TM_MAX)
    cap = _vmem_capacity_bytes()
    if tn is None:
        budget = min(cap // 2, 96 << 20)
        n_ceil = _round_up(N, 128)
        tn = min(128, n_ceil)
        for cand in sorted({min(c, n_ceil) for c in _TN_CANDIDATES}, reverse=True):
            if _tile_vmem_bytes(tm, cand, K, x_item, w_item, out_item) <= budget:
                tn = cand
                break
        # TODO(synk): for very large in_features (K), add a K grid axis with an
        # f32 VMEM accumulator instead of only clamping tn.

    n_tiles = pl.cdiv(N, tn)
    b_tiles = pl.cdiv(B, tm)

    est = _tile_vmem_bytes(tm, tn, K, x_item, w_item, out_item)
    vmem_limit = max(32 << 20, est + (8 << 20))
    vmem_limit = int(min(vmem_limit, cap - (8 << 20), 128 << 20))

    # Weight is streamed exactly once (outer-axis-only index_map); x is
    # re-streamed per N-tile only when there is more than one batch tile.
    x_reads = 1 if b_tiles == 1 else n_tiles
    flops = 2 * B * N * K + 3 * N * K
    bytes_accessed = (x_reads * B * K * x_item
                      + N * K * w_item
                      + B * N * out_item)

    return pl.pallas_call(
        _normal_fc_kernel,
        out_shape=jax.ShapeDtypeStruct((B, N), x.dtype),
        grid=(n_tiles, b_tiles),                      # N-tiles outer, B-tiles inner
        in_specs=[
            pl.BlockSpec((tm, K), lambda j, i: (i, 0)),   # activations
            pl.BlockSpec((tn, K), lambda j, i: (j, 0)),   # weight rows (outer axis only)
        ],
        out_specs=pl.BlockSpec((tm, tn), lambda j, i: (i, j)),
        compiler_params=pltpu.CompilerParams(
            dimension_semantics=("parallel", "arbitrary"),
            vmem_limit_bytes=vmem_limit,
        ),
        cost_estimate=pl.CostEstimate(
            flops=flops, transcendentals=N, bytes_accessed=int(bytes_accessed)
        ),
    )(x, weight)


def _reference(x, weight):
    w32 = weight.astype(jnp.float32)
    w_n = w32 / jnp.maximum(
        jnp.sqrt(jnp.sum(w32 * w32, axis=1, keepdims=True)), 1e-12
    )
    return x.astype(jnp.float32) @ w_n.T


if __name__ == "__main__":
    key = jax.random.PRNGKey(0)

    # --- Case 1: toy shape (f32, exact path) ---
    in_features, out_features, batch = 32, 16, 8
    k_x, k_w, key = jax.random.split(key, 3)
    bound = math.sqrt(6.0 / (in_features + out_features))  # xavier_uniform_
    weight = jax.random.uniform(
        k_w, (out_features, in_features), dtype=jnp.float32,
        minval=-bound, maxval=bound,
    )
    x = jax.random.normal(k_x, (batch, in_features), dtype=jnp.float32)
    label = jnp.zeros((batch,), dtype=jnp.int32)  # unused, matches PyTorch signature

    out = normal_fc_layer(x, weight, label)
    jax.block_until_ready(out)
    ref = _reference(x, weight)
    assert out.shape == (batch, out_features)
    assert jnp.allclose(out, ref, atol=1e-5, rtol=1e-5), "f32 case 1 mismatch"

    # --- Case 2: ragged N and B (tail-block masking, no padding), f32 ---
    in_features, out_features, batch = 64, 300, 5
    k_x, k_w, key = jax.random.split(key, 3)
    bound = math.sqrt(6.0 / (in_features + out_features))
    weight2 = jax.random.uniform(
        k_w, (out_features, in_features), dtype=jnp.float32,
        minval=-bound, maxval=bound,
    )
    x2 = jax.random.normal(k_x, (batch, in_features), dtype=jnp.float32)
    out2 = normal_fc_layer(x2, weight2)
    jax.block_until_ready(out2)
    ref2 = _reference(x2, weight2)
    assert out2.shape == (batch, out_features)
    assert jnp.allclose(out2, ref2, atol=1e-5, rtol=1e-5), "f32 case 2 mismatch"

    # --- Case 3: bf16 inputs (MXU bf16 matmul, f32 accumulation + norm) ---
    x3 = x2.astype(jnp.bfloat16)
    w3 = weight2.astype(jnp.bfloat16)
    out3 = normal_fc_layer(x3, w3)
    jax.block_until_ready(out3)
    ref3 = _reference(x3, w3)
    assert jnp.allclose(
        out3.astype(jnp.float32), ref3, atol=1e-1, rtol=1e-1
    ), "bf16 case mismatch"

    # --- Case 4: multi-tile grid on both axes (explicit small tiles), f32 ---
    in_features, out_features, batch = 32, 200, 20
    k_x, k_w, key = jax.random.split(key, 3)
    bound = math.sqrt(6.0 / (in_features + out_features))
    weight4 = jax.random.uniform(
        k_w, (out_features, in_features), dtype=jnp.float32,
        minval=-bound, maxval=bound,
    )
    x4 = jax.random.normal(k_x, (batch, in_features), dtype=jnp.float32)
    out4 = normal_fc_layer(x4, weight4, tm=8, tn=128)
    jax.block_until_ready(out4)
    ref4 = _reference(x4, weight4)
    assert out4.shape == (batch, out_features)
    assert jnp.allclose(out4, ref4, atol=1e-5, rtol=1e-5), "f32 case 4 mismatch"

    print("KERNEL_OK")
</pallas_src>

<mosaic_0001>
module attributes {stable_mosaic.version = 11 : i64} {
  func.func @_normal_fc_kernel(%arg0: i32, %arg1: i32, %arg2: memref<8x32xf32, #tpu.memory_space<vmem>>, %arg3: memref<128x32xf32, #tpu.memory_space<vmem>>, %arg4: memref<8x128xf32, #tpu.memory_space<vmem>>) attributes {dimension_semantics = [#tpu.dimension_semantics<parallel>, #tpu.dimension_semantics<arbitrary>], iteration_bounds = array<i64: 1, 1>, scalar_prefetch = 0 : i64, scratch_operands = 0 : i64, tpu.core_type = #tpu.core_type<tc>, window_params = [{transform_indices = @transform_0, window_bounds = array<i64: 8, 32>}, {transform_indices = @transform_1, window_bounds = array<i64: 128, 32>}, {transform_indices = @transform_2, window_bounds = array<i64: 8, 128>}]} {
    %c0 = arith.constant 0 : index
    %c0_0 = arith.constant 0 : index
    %0 = vector.load %arg3[%c0, %c0_0] : memref<128x32xf32, #tpu.memory_space<vmem>>, vector<128x32xf32>
    %1 = arith.mulf %0, %0 : vector<128x32xf32>
    %cst = arith.constant dense<0.000000e+00> : vector<128xf32>
    %2 = vector.multi_reduction <add>, %1, %cst [1] : vector<128x32xf32> to vector<128xf32>
    %3 = vector.shape_cast %2 : vector<128xf32> to vector<128x1xf32>
    %cst_1 = arith.constant 1.000000e-24 : f32
    %4 = vector.broadcast %cst_1 : f32 to vector<128x1xf32>
    %5 = arith.maximumf %3, %4 : vector<128x1xf32>
    %6 = math.rsqrt %5 : vector<128x1xf32>
    %7 = vector.broadcast %6 : vector<128x1xf32> to vector<128x32xf32>
    %8 = arith.mulf %0, %7 : vector<128x32xf32>
    %c0_2 = arith.constant 0 : index
    %c0_3 = arith.constant 0 : index
    %9 = vector.load %arg2[%c0_2, %c0_3] : memref<8x32xf32, #tpu.memory_space<vmem>>, vector<8x32xf32>
    %cst_4 = arith.constant dense<0.000000e+00> : vector<8x128xf32>
    %10 = tpu.matmul %9, %8, %cst_4 {dimension_numbers = #tpu.dot_dimension_numbers<[1], [1], [0], [0], [0, 0, 1, 0], [], []>} : vector<8x32xf32>, vector<128x32xf32>, vector<8x128xf32> -> vector<8x128xf32>
    %c0_5 = arith.constant 0 : index
    %c0_6 = arith.constant 0 : index
    %11 = vector.load %arg4[%c0_5, %c0_6] : memref<8x128xf32, #tpu.memory_space<vmem>>, vector<8x128xf32>
    tpu.vector_store %arg4[%c0_5, %c0_6], %10 {strides = array<i32>} : memref<8x128xf32, #tpu.memory_space<vmem>>, vector<8x128xf32>,
    return
  }
  func.func @transform_0(%arg0: i32, %arg1: i32) -> (i32, i32) {
    %c0_i32 = arith.constant 0 : i32
    %c0_i32_0 = arith.constant 0 : i32
    return %arg1, %c0_i32 : i32, i32
  }
  func.func @transform_1(%arg0: i32, %arg1: i32) -> (i32, i32) {
    %c0_i32 = arith.constant 0 : i32
    %c0_i32_0 = arith.constant 0 : i32
    return %arg0, %c0_i32 : i32, i32
  }
  func.func @transform_2(%arg0: i32, %arg1: i32) -> (i32, i32) {
    %c0_i32 = arith.constant 0 : i32
    return %arg1, %arg0 : i32, i32
  }
}

</mosaic_0001>

<llo_original>
// kernel: tpu_custom_call.1
$region0: #{tpu_custom_call.1}
  #allocation0 [shape = 'u32[]', space=smem, size = 0x4, offset = 0x4, fixed_abs, tag = 'smem constant byte address 0x4 - core index']
  #allocation1 [shape = 'u32[144,128]{1,0:T(1,128)}', space=vmem, size = 0x12000, scoped, tag = 'internal scratch']
  %s0 = inlined_call_operand.hbm [shape: f32[8,32], index: 0, kind: input, shape index: {}]
  %s1 = inlined_call_operand.hbm [shape: f32[16,32], index: 1, kind: input, shape index: {}]
  %s2 = inlined_call_operand.hbm [shape: f32[8,16], index: 2, kind: output, shape index: {}]
  %s3 = sld [smem:[#allocation0]]
  $region26: #{tpu_custom_call.1} parent=0
    _
  %s5 = ssub.s32 1, %s3
  %s6 = scalar_select 0, %s5, %s3
  $region1: #{tpu_custom_call.1} parent=0
    #allocation2 [shape = 'u8[4096]{0}', space=vmem, size = 0x1000, scoped, tag = 'input window, operand 0, single buffered']
    #allocation3 [shape = 's32[1]{0}', space=sflag, size = 0x4, scoped, tag = 'scoped memory for tpu_custom_call.1']
    #allocation4 [shape = 's32[1]{0}', space=sflag, size = 0x4, scoped, tag = 'scoped memory for tpu_custom_call.1']
    #allocation5 [shape = 'u8[65536]{0}', space=vmem, size = 0x10000, scoped, tag = 'input window, operand 1, single buffered']
    #allocation6 [shape = 's32[1]{0}', space=sflag, size = 0x4, scoped, tag = 'scoped memory for tpu_custom_call.1']
    #allocation7 [shape = 'u8[4096]{0}', space=vmem, size = 0x1000, scoped, tag = 'output window, operand 0, single buffered']
    %7 = vsyncpa [#allocation3], 0
    %8 = vsyncpa [#allocation6], 0
    %9 = vsyncpa [#allocation4], 0
    // Predicated region
    $region2: #{tpu_custom_call.1} parent=1 // pred_check
      _
    $region3: #{tpu_custom_call.1} parent=1 // pred_check_branch
      %11 = sbr.rel (0) target = $region5
    $region4: #{tpu_custom_call.1} parent=1 // pred_region
      %s13 = ssub.s32 128, 128
      %14 = vsyncadd [#allocation3], %s13
      %s16 = sshll.u32 [#allocation2], 4
      %s17 = int_to_ptr.vmem [resolvable:$true] %s16
      %19 = dma.hbm_to_vmem [thread:$0]  %s0, 128, %s17, [#allocation3]
    $region5: #{tpu_custom_call.1} parent=1 // pred_fallthru
      _
    // Predicated region
    $region6: #{tpu_custom_call.1} parent=1 // pred_check
      _
    $region7: #{tpu_custom_call.1} parent=1 // pred_check_branch
      %21 = sbr.rel (0) target = $region9
    $region8: #{tpu_custom_call.1} parent=1 // pred_region
      %s23 = ssub.s32 2048, 256
      %24 = vsyncadd [#allocation6], %s23
      %s25 = sshll.u32 [#allocation5], 4
      %s26 = int_to_ptr.vmem [resolvable:$true] %s25
      %31 = dma.hbm_to_vmem [thread:$0]  %s1, 256, %s26, [#allocation6], 128, 128, 8
    $region9: #{tpu_custom_call.1} parent=1 // pred_fallthru
      _
    // Predicated region
    $region10: #{tpu_custom_call.1} parent=1 // pred_check
      _
    $region11: #{tpu_custom_call.1} parent=1 // pred_check_branch
      %33 = sbr.rel (0) target = $region13
    $region12: #{tpu_custom_call.1} parent=1 // pred_region
      %34 = dma.done [#allocation3], 128
    $region13: #{tpu_custom_call.1} parent=1 // pred_fallthru
      _
    // Predicated region
    $region14: #{tpu_custom_call.1} parent=1 // pred_check
      _
    $region15: #{tpu_custom_call.1} parent=1 // pred_check_branch
      %36 = sbr.rel (0) target = $region17
    $region16: #{tpu_custom_call.1} parent=1 // pred_region
      %37 = dma.done [#allocation6], 2048
    $region17: #{tpu_custom_call.1} parent=1 // pred_fallthru
      _
    %v38 = vld [vmem:[#allocation5] sm:$0xff]
    %v39 = vld [vmem:[#allocation5 + $0x8] sm:$0xff]
    %v40 = vld [vmem:[#allocation5 + $0x10] sm:$0xff]
    %v41 = vld [vmem:[#allocation5 + $0x18] sm:$0xff]
    %v42 = vld [vmem:[#allocation5 + $0x20] sm:$0xff]
    %v43 = vld [vmem:[#allocation5 + $0x28] sm:$0xff]
    %v44 = vld [vmem:[#allocation5 + $0x30] sm:$0xff]
    %v45 = vld [vmem:[#allocation5 + $0x38] sm:$0xff]
    %v46 = vld [vmem:[#allocation5 + $0x40] sm:$0xff]
    %v47 = vld [vmem:[#allocation5 + $0x48] sm:$0xff]
    %v48 = vld [vmem:[#allocation5 + $0x50] sm:$0xff]
    %v49 = vld [vmem:[#allocation5 + $0x58] sm:$0xff]
    %v50 = vld [vmem:[#allocation5 + $0x60] sm:$0xff]
    %v51 = vld [vmem:[#allocation5 + $0x68] sm:$0xff]
    %v52 = vld [vmem:[#allocation5 + $0x70] sm:$0xff]
    %v53 = vld [vmem:[#allocation5 + $0x78] sm:$0xff]
    %v54 = vmul.f32 %v38, %v38
    %v55 = vmul.f32 %v39, %v39
    %v56 = vmul.f32 %v40, %v40
    %v57 = vmul.f32 %v41, %v41
    %v58 = vmul.f32 %v42, %v42
    %v59 = vmul.f32 %v43, %v43
    %v60 = vmul.f32 %v44, %v44
    %v61 = vmul.f32 %v45, %v45
    %v62 = vmul.f32 %v46, %v46
    %v63 = vmul.f32 %v47, %v47
    %v64 = vmul.f32 %v48, %v48
    %v65 = vmul.f32 %v49, %v49
    %v66 = vmul.f32 %v50, %v50
    %v67 = vmul.f32 %v51, %v51
    %v68 = vmul.f32 %v52, %v52
    %v69 = vmul.f32 %v53, %v53
    %vm70 = vcmask 261120
    %v71 = vsel %vm70, %v54, 0.0
    %72 = vadd.xlane.f32.xlu0 %v71
    %v73 = vpop.xlane.xlu0 %72
    %v74 = vsel %vm70, %v55, 0.0
    %75 = vadd.xlane.f32.xlu0 %v74
    %v76 = vpop.xlane.xlu0 %75
    %v77 = vsel %vm70, %v56, 0.0
    %78 = vadd.xlane.f32.xlu0 %v77
    %v79 = vpop.xlane.xlu0 %78
    %v80 = vsel %vm70, %v57, 0.0
    %81 = vadd.xlane.f32.xlu0 %v80
    %v82 = vpop.xlane.xlu0 %81
    %v83 = vsel %vm70, %v58, 0.0
    %84 = vadd.xlane.f32.xlu0 %v83
    %v85 = vpop.xlane.xlu0 %84
    %v86 = vsel %vm70, %v59, 0.0
    %87 = vadd.xlane.f32.xlu0 %v86
    %v88 = vpop.xlane.xlu0 %87
    %v89 = vsel %vm70, %v60, 0.0
    %90 = vadd.xlane.f32.xlu0 %v89
    %v91 = vpop.xlane.xlu0 %90
    %v92 = vsel %vm70, %v61, 0.0
    %93 = vadd.xlane.f32.xlu0 %v92
    %v94 = vpop.xlane.xlu0 %93
    %v95 = vsel %vm70, %v62, 0.0
    %96 = vadd.xlane.f32.xlu0 %v95
    %v97 = vpop.xlane.xlu0 %96
    %v98 = vsel %vm70, %v63, 0.0
    %99 = vadd.xlane.f32.xlu0 %v98
    %v100 = vpop.xlane.xlu0 %99
    %v101 = vsel %vm70, %v64, 0.0
    %102 = vadd.xlane.f32.xlu0 %v101
    %v103 = vpop.xlane.xlu0 %102
    %v104 = vsel %vm70, %v65, 0.0
    %105 = vadd.xlane.f32.xlu0 %v104
    %v106 = vpop.xlane.xlu0 %105
    %v107 = vsel %vm70, %v66, 0.0
    %108 = vadd.xlane.f32.xlu0 %v107
    %v109 = vpop.xlane.xlu0 %108
    %v110 = vsel %vm70, %v67, 0.0
    %111 = vadd.xlane.f32.xlu0 %v110
    %v112 = vpop.xlane.xlu0 %111
    %v113 = vsel %vm70, %v68, 0.0
    %114 = vadd.xlane.f32.xlu0 %v113
    %v115 = vpop.xlane.xlu0 %114
    %v116 = vsel %vm70, %v69, 0.0
    %117 = vadd.xlane.f32.xlu0 %v116
    %v118 = vpop.xlane.xlu0 %117
    %v119 = vmax.f32 %v73, 1e-24
    %v120 = vmax.f32 %v76, 1e-24
    %v121 = vmax.f32 %v79, 1e-24
    %v122 = vmax.f32 %v82, 1e-24
    %v123 = vmax.f32 %v85, 1e-24
    %v124 = vmax.f32 %v88, 1e-24
    %v125 = vmax.f32 %v91, 1e-24
    %v126 = vmax.f32 %v94, 1e-24
    %v127 = vmax.f32 %v97, 1e-24
    %v128 = vmax.f32 %v100, 1e-24
    %v129 = vmax.f32 %v103, 1e-24
    %v130 = vmax.f32 %v106, 1e-24
    %v131 = vmax.f32 %v109, 1e-24
    %v132 = vmax.f32 %v112, 1e-24
    %v133 = vmax.f32 %v115, 1e-24
    %v134 = vmax.f32 %v118, 1e-24
    %v135 = vrsqrt.pop %v119
    %v136 = vrsqrt.pop %v120
    %v137 = vrsqrt.pop %v121
    %v138 = vrsqrt.pop %v122
    %v139 = vrsqrt.pop %v123
    %v140 = vrsqrt.pop %v124
    %v141 = vrsqrt.pop %v125
    %v142 = vrsqrt.pop %v126
    %v143 = vrsqrt.pop %v127
    %v144 = vrsqrt.pop %v128
    %v145 = vrsqrt.pop %v129
    %v146 = vrsqrt.pop %v130
    %v147 = vrsqrt.pop %v131
    %v148 = vrsqrt.pop %v132
    %v149 = vrsqrt.pop %v133
    %v150 = vrsqrt.pop %v134
    %v151 = vmul.f32 %v38, %v135
    %v152 = vmul.f32 %v39, %v136
    %v153 = vmul.f32 %v40, %v137
    %v154 = vmul.f32 %v41, %v138
    %v155 = vmul.f32 %v42, %v139
    %v156 = vmul.f32 %v43, %v140
    %v157 = vmul.f32 %v44, %v141
    %v158 = vmul.f32 %v45, %v142
    %v159 = vmul.f32 %v46, %v143
    %v160 = vmul.f32 %v47, %v144
    %v161 = vmul.f32 %v48, %v145
    %v162 = vmul.f32 %v49, %v146
    %v163 = vmul.f32 %v50, %v147
    %v164 = vmul.f32 %v51, %v148
    %v165 = vmul.f32 %v52, %v149
    %v166 = vmul.f32 %v53, %v150
    %v167 = vld [vmem:[#allocation2] sm:$0xff]
    %v169 = vsel %vm70, %v167, 0
    %v172 = vsel %vm70, %v151, 0
    %v175 = vsel %vm70, %v152, 0
    %v178 = vsel %vm70, %v153, 0
    %v181 = vsel %vm70, %v154, 0
    %v184 = vsel %vm70, %v155, 0
    %v187 = vsel %vm70, %v156, 0
    %v190 = vsel %vm70, %v157, 0
    %v193 = vsel %vm70, %v158, 0
    %v196 = vsel %vm70, %v159, 0
    %v199 = vsel %vm70, %v160, 0
    %v202 = vsel %vm70, %v161, 0
    %v205 = vsel %vm70, %v162, 0
    %v208 = vsel %vm70, %v163, 0
    %v211 = vsel %vm70, %v164, 0
    %v214 = vsel %vm70, %v165, 0
    %v217 = vsel %vm70, %v166, 0
    %219 = vmatprep.subr.mxu0 0.0
    %220 = vmatpush1.xpose.msra.mxu0 %v172
    %221 = vmatprep.subr.mxu0 0.0
    %222 = vmatpush1.xpose.msra.mxu0 %v175
    %223 = vmatprep.subr.mxu0 0.0
    %224 = vmatpush1.xpose.msra.mxu0 %v178
    %225 = vmatprep.subr.mxu0 0.0
    %226 = vmatpush1.xpose.msra.mxu0 %v181
    %227 = vmatprep.subr.mxu0 0.0
    %228 = vmatpush1.xpose.msra.mxu0 %v184
    %229 = vmatprep.subr.mxu0 0.0
    %230 = vmatpush1.xpose.msra.mxu0 %v187
    %231 = vmatprep.subr.mxu0 0.0
    %232 = vmatpush1.xpose.msra.mxu0 %v190
    %233 = vmatprep.subr.mxu0 0.0
    %234 = vmatpush1.xpose.msra.mxu0 %v193
    %235 = vmatprep.subr.mxu0 0.0
    %236 = vmatpush1.xpose.msra.mxu0 %v196
    %237 = vmatprep.subr.mxu0 0.0
    %238 = vmatpush1.xpose.msra.mxu0 %v199
    %239 = vmatprep.subr.mxu0 0.0
    %240 = vmatpush1.xpose.msra.mxu0 %v202
    %241 = vmatprep.subr.mxu0 0.0
    %242 = vmatpush1.xpose.msra.mxu0 %v205
    %243 = vmatprep.subr.mxu0 0.0
    %244 = vmatpush1.xpose.msra.mxu0 %v208
    %245 = vmatprep.subr.mxu0 0.0
    %246 = vmatpush1.xpose.msra.mxu0 %v211
    %247 = vmatprep.subr.mxu0 0.0
    %248 = vmatpush1.xpose.msra.mxu0 %v214
    %249 = vmatprep.subr.mxu0 0.0
    %250 = vmatpush1.xpose.msra.mxu0 %v217
    %251 = vmatprep.subr.mxu0 0.0
    %252 = vmatpush1.xpose.msra.mxu0 0.0
    %253 = vmatprep.subr.mxu0 0.0
    %254 = vmatpush1.xpose.msra.mxu0 0.0
    %255 = vmatprep.subr.mxu0 0.0
    %256 = vmatpush1.xpose.msra.mxu0 0.0
    %257 = vmatprep.subr.mxu0 0.0
    %258 = vmatpush1.xpose.msra.mxu0 0.0
    %259 = vmatprep.subr.mxu0 0.0
    %260 = vmatpush1.xpose.msra.mxu0 0.0
    %261 = vmatprep.subr.mxu0 0.0
    %262 = vmatpush1.xpose.msra.mxu0 0.0
    %263 = vmatprep.subr.mxu0 0.0
    %264 = vmatpush1.xpose.msra.mxu0 0.0
    %265 = vmatprep.subr.mxu0 0.0
    %266 = vmatpush1.xpose.msra.mxu0 0.0
    %267 = vmatprep.subr.mxu0 0.0
    %268 = vmatpush1.xpose.msra.mxu0 0.0
    %269 = vmatprep.subr.mxu0 0.0
    %270 = vmatpush1.xpose.msra.mxu0 0.0
    %271 = vmatprep.subr.mxu0 0.0
    %272 = vmatpush1.xpose.msra.mxu0 0.0
    %273 = vmatprep.subr.mxu0 0.0
    %274 = vmatpush1.xpose.msra.mxu0 0.0
    %275 = vmatprep.subr.mxu0 0.0
    %276 = vmatpush1.xpose.msra.mxu0 0.0
    %277 = vmatprep.subr.mxu0 0.0
    %278 = vmatpush1.xpose.msra.mxu0 0.0
    %279 = vmatprep.subr.mxu0 0.0
    %280 = vmatpush1.xpose.msra.mxu0 0.0
    %281 = vmatprep.subr.mxu0 0.0
    %282 = vmatpush1.xpose.msra.mxu0 0.0
    %283 = vmatprep.mubr.f32.mxu0 0.0
    %284 = vmatmul.mubr.f32.gmra.mrb[0].mxu0 %v169
    %v285 = vpop.f32.mrb[0].mxu0
    %v286 = vadd.f32 0.0, %v285
    %v287 = vpop.f32.mrb[0].mxu0
    %288 = vdwg.mxu0
    %289 = vst [vmem:[#allocation7] sm:$0xff] %v286
    // Predicated region
    $region18: #{tpu_custom_call.1} parent=1 // pred_check
      _
    $region19: #{tpu_custom_call.1} parent=1 // pred_check_branch
      %291 = sbr.rel (0) target = $region21
    $region20: #{tpu_custom_call.1} parent=1 // pred_region
      %s293 = ssub.s32 128, 128
      %294 = vsyncadd [#allocation4], %s293
      %s296 = sshll.u32 [#allocation7], 4
      %s297 = int_to_ptr.vmem [resolvable:$true] %s296
      %299 = dma.vmem_to_hbm [thread:$0]  %s297, 128, %s2, [#allocation4]
    $region21: #{tpu_custom_call.1} parent=1 // pred_fallthru
      _
    // Predicated region
    $region22: #{tpu_custom_call.1} parent=1 // pred_check
      _
    $region23: #{tpu_custom_call.1} parent=1 // pred_check_branch
      %301 = sbr.rel (0) target = $region25
    $region24: #{tpu_custom_call.1} parent=1 // pred_region
      %302 = dma.done [#allocation4], 128
    $region25: #{tpu_custom_call.1} parent=1 // pred_fallthru
      _
    %303 = vsyncpa [#allocation3], 1
    %304 = vsyncpa [#allocation6], 1
    %305 = vsyncpa [#allocation4], 1

</llo_original>
